<compile_context>
chip_gen: v6e
topology: v6e:2x2x1
jax: 0.10.0
libtpu: 0.0.40
codegen_flags: <defaults>
</compile_context>

<pallas_src>
import functools

import jax
import jax.numpy as jnp
from jax.experimental import pallas as pl
from jax.experimental.pallas import tpu as pltpu


def _ce_label_smoothing_kernel(pred_ref, tgt_ref, out_ref, *,
                               smoothing, n_rows, c_real, tn, mask_rows):
    pred = pred_ref[...].astype(jnp.float32)            # (TN, Cpad) f32
    tgt = tgt_ref[...]                                   # (TN, 1) int32
    tn_, c_pad = pred.shape

    # Numerically stable log-partition per row.  Padded classes hold -1e30, so
    # they never win the max and contribute ~0 to the exp-sum.
    row_max = jnp.max(pred, axis=1, keepdims=True)                        # (TN, 1)
    lse = jnp.log(jnp.sum(jnp.exp(pred - row_max), axis=1, keepdims=True))
    logz = row_max + lse                                                  # (TN, 1)

    # Single fused class reduction:
    #   weighted = sum_c pred_c * [(s/C) + (1 - s) * [c == target]]
    cls_ids = jax.lax.broadcasted_iota(jnp.int32, (1, c_pad), 1)          # (1, Cpad)
    coef_miss = smoothing / c_real
    coef_hit = (1.0 - smoothing) + coef_miss
    if c_pad > c_real:
        base = jnp.where(cls_ids < c_real, coef_miss, 0.0)                # (1, Cpad)
    else:
        base = coef_miss
    w = jnp.where(cls_ids == tgt, coef_hit, base)                         # (TN, Cpad)
    weighted = jnp.sum(pred * w, axis=1, keepdims=True)                   # (TN, 1)

    per_row = logz - weighted                                             # (TN, 1)

    if mask_rows:
        # Rows past the real batch in the final partial tile read whatever is
        # in the HBM padding; the row-wise select discards them (jnp.where
        # never propagates NaN/Inf from the unselected branch).
        row0 = pl.program_id(0) * tn
        row_ids = row0 + jax.lax.broadcasted_iota(jnp.int32, (tn_, 1), 0)
        per_row = jnp.where(row_ids < n_rows, per_row, 0.0)

    out_ref[...] = jnp.broadcast_to(
        jnp.sum(per_row, axis=0, keepdims=True), out_ref.shape)


def ce_loss_with_label_smoothing(pred, target, smoothing=0.05):
    """pred: (N, C) float (f32 or bf16), target: (N,) int -> scalar f32 loss."""
    n, c = pred.shape
    tgt2d = target.astype(jnp.int32).reshape(n, 1)

    # --- pad the class axis to a full 128-lane vreg when C is small ---------
    LANE = 128
    c_pad = c if c >= LANE else LANE
    if c_pad != c:
        pred = jnp.pad(pred, ((0, 0), (0, c_pad - c)),
                       constant_values=jnp.asarray(-1e30, pred.dtype))

    # --- VMEM-aware row-tile selection ---------------------------------------
    itemsize = jnp.dtype(pred.dtype).itemsize
    sub = 16 if itemsize < 4 else 8                     # sublane packing granule
    try:
        info = pltpu.get_tpu_info()
        vmem_cap = int(getattr(info, "vmem_capacity_bytes", 0) or 0)
    except Exception:
        vmem_cap = 0
    if vmem_cap <= 0:
        vmem_cap = 64 * 1024 * 1024                     # conservative: v7x per-TC

    # Live VMEM per tile row: 2x double-buffered input + ~4 f32-wide
    # temporaries (f32 copy, exp arg, weights, product) on the hot path.
    per_row_bytes = c_pad * (2 * itemsize + 4 * 4)
    budget = int(vmem_cap * 0.6)
    tn = (budget // per_row_bytes) // sub * sub
    tn = max(sub, min(tn, 8192))                        # generous cap (not 1024)
    n_pad_rows = ((n + sub - 1) // sub) * sub
    tn = max(sub, min(tn, n_pad_rows))

    total_blocks = pl.cdiv(n, tn)
    vmem_limit = min(int(vmem_cap * 0.75), 96 * 1024 * 1024)

    kernel = functools.partial(
        _ce_label_smoothing_kernel,
        smoothing=float(smoothing),
        n_rows=n,
        c_real=c,
        tn=tn,
        mask_rows=(n % tn != 0),
    )

    out = pl.pallas_call(
        kernel,
        out_shape=jax.ShapeDtypeStruct((1, 128 * total_blocks), jnp.float32),
        grid=(total_blocks,),
        in_specs=[
            pl.BlockSpec((tn, c_pad), lambda i: (i, 0)),
            pl.BlockSpec((tn, 1), lambda i: (i, 0)),
        ],
        out_specs=pl.BlockSpec((1, 128), lambda i: (0, i)),
        compiler_params=pltpu.CompilerParams(
            dimension_semantics=("parallel",),
            vmem_limit_bytes=vmem_limit,
        ),
    )(pred, tgt2d)

    partial_sums = out[0, ::128]                        # one f32 per row-block
    return jnp.sum(partial_sums) / jnp.float32(n)


def _reference(pred, target, smoothing=0.05):
    n, c = pred.shape
    one_hot = jax.nn.one_hot(target, c, dtype=jnp.float32)
    smoothed = (1.0 - smoothing) * one_hot + smoothing / c
    log_prob = jax.nn.log_softmax(pred.astype(jnp.float32), axis=1)
    return (-(smoothed * log_prob).sum(axis=1)).mean()


if __name__ == "__main__":
    key = jax.random.PRNGKey(0)
    k1, k2 = jax.random.split(key)

    N, C = 8, 32  # small demo: batch of 8 rows, 32 classes
    pred = jax.random.normal(k1, (N, C), dtype=jnp.float32)
    target = jax.random.randint(k2, (N,), 0, C, dtype=jnp.int32)

    loss = ce_loss_with_label_smoothing(pred, target, smoothing=0.05)
    loss = jax.block_until_ready(loss)

    ref = _reference(pred, target, smoothing=0.05)
    assert jnp.allclose(loss, ref, atol=1e-5, rtol=1e-5), (loss, ref)

    print("KERNEL_OK")
</pallas_src>

<mosaic_0001>
module attributes {stable_mosaic.version = 11 : i64} {
  func.func @_ce_label_smoothing_kernel(%arg0: i32, %arg1: memref<8x128xf32, #tpu.memory_space<vmem>>, %arg2: memref<8x1xi32, #tpu.memory_space<vmem>>, %arg3: memref<1x128xf32, #tpu.memory_space<vmem>>) attributes {dimension_semantics = [#tpu.dimension_semantics<parallel>], iteration_bounds = array<i64: 1>, scalar_prefetch = 0 : i64, scratch_operands = 0 : i64, tpu.core_type = #tpu.core_type<tc>, window_params = [{transform_indices = @transform_0, window_bounds = array<i64: 8, 128>}, {transform_indices = @transform_1, window_bounds = array<i64: 8, 1>}, {transform_indices = @transform_2, window_bounds = array<i64: 1, 128>}]} {
    %c0 = arith.constant 0 : index
    %c0_0 = arith.constant 0 : index
    %0 = vector.load %arg1[%c0, %c0_0] : memref<8x128xf32, #tpu.memory_space<vmem>>, vector<8x128xf32>
    %c0_1 = arith.constant 0 : index
    %c0_2 = arith.constant 0 : index
    %1 = vector.load %arg2[%c0_1, %c0_2] : memref<8x1xi32, #tpu.memory_space<vmem>>, vector<8x1xi32>
    %cst = arith.constant dense<0xFF800000> : vector<8xf32>
    %2 = vector.multi_reduction <maximumf>, %0, %cst [1] : vector<8x128xf32> to vector<8xf32>
    %3 = vector.shape_cast %2 : vector<8xf32> to vector<8x1xf32>
    %4 = vector.broadcast %3 : vector<8x1xf32> to vector<8x128xf32>
    %5 = arith.subf %0, %4 : vector<8x128xf32>
    %6 = math.exp %5 : vector<8x128xf32>
    %cst_3 = arith.constant dense<0.000000e+00> : vector<8xf32>
    %7 = vector.multi_reduction <add>, %6, %cst_3 [1] : vector<8x128xf32> to vector<8xf32>
    %8 = vector.shape_cast %7 : vector<8xf32> to vector<8x1xf32>
    %9 = math.log %8 : vector<8x1xf32>
    %10 = arith.addf %3, %9 : vector<8x1xf32>
    %11 = tpu.iota {dimensions = array<i32: 1>} : vector<1x128xi32>
    %c32_i32 = arith.constant 32 : i32
    %12 = vector.broadcast %c32_i32 : i32 to vector<1x128xi32>
    %13 = arith.cmpi slt, %11, %12 : vector<1x128xi32>
    %cst_4 = arith.constant 1.562500e-03 : f32
    %cst_5 = arith.constant 0.000000e+00 : f32
    %14 = vector.broadcast %cst_4 : f32 to vector<1x128xf32>
    %15 = vector.broadcast %cst_5 : f32 to vector<1x128xf32>
    %16 = arith.select %13, %14, %15 : vector<1x128xi1>, vector<1x128xf32>
    %17 = vector.broadcast %11 : vector<1x128xi32> to vector<8x128xi32>
    %18 = vector.broadcast %1 : vector<8x1xi32> to vector<8x128xi32>
    %19 = arith.cmpi eq, %17, %18 : vector<8x128xi32>
    %cst_6 = arith.constant 0.951562523 : f32
    %20 = vector.broadcast %cst_6 : f32 to vector<8x128xf32>
    %21 = vector.shape_cast %16 : vector<1x128xf32> to vector<1x128xf32>
    %22 = vector.broadcast %21 : vector<1x128xf32> to vector<8x128xf32>
    %23 = arith.select %19, %20, %22 : vector<8x128xi1>, vector<8x128xf32>
    %24 = arith.mulf %0, %23 : vector<8x128xf32>
    %cst_7 = arith.constant dense<0.000000e+00> : vector<8xf32>
    %25 = vector.multi_reduction <add>, %24, %cst_7 [1] : vector<8x128xf32> to vector<8xf32>
    %26 = vector.shape_cast %25 : vector<8xf32> to vector<8x1xf32>
    %27 = arith.subf %10, %26 : vector<8x1xf32>
    %cst_8 = arith.constant dense<0.000000e+00> : vector<1xf32>
    %28 = vector.multi_reduction <add>, %27, %cst_8 [0] : vector<8x1xf32> to vector<1xf32>
    %29 = vector.shape_cast %28 : vector<1xf32> to vector<1x1xf32>
    %30 = vector.shape_cast %29 : vector<1x1xf32> to vector<1x1xf32>
    %31 = vector.broadcast %30 : vector<1x1xf32> to vector<1x128xf32>
    %c0_9 = arith.constant 0 : index
    %c0_10 = arith.constant 0 : index
    %32 = vector.load %arg3[%c0_9, %c0_10] : memref<1x128xf32, #tpu.memory_space<vmem>>, vector<1x128xf32>
    tpu.vector_store %arg3[%c0_9, %c0_10], %31 {strides = array<i32>} : memref<1x128xf32, #tpu.memory_space<vmem>>, vector<1x128xf32>,
    return
  }
  func.func @transform_0(%arg0: i32) -> (i32, i32) {
    %c0_i32 = arith.constant 0 : i32
    %c0_i32_0 = arith.constant 0 : i32
    return %arg0, %c0_i32 : i32, i32
  }
  func.func @transform_1(%arg0: i32) -> (i32, i32) {
    %c0_i32 = arith.constant 0 : i32
    %c0_i32_0 = arith.constant 0 : i32
    return %arg0, %c0_i32 : i32, i32
  }
  func.func @transform_2(%arg0: i32) -> (i32, i32) {
    %c0_i32 = arith.constant 0 : i32
    %c0_i32_0 = arith.constant 0 : i32
    return %c0_i32, %arg0 : i32, i32
  }
}

</mosaic_0001>

<llo_original>
// kernel: tpu_custom_call.1
$region0: #{tpu_custom_call.1}
  #allocation0 [shape = 'u32[]', space=smem, size = 0x4, offset = 0x4, fixed_abs, tag = 'smem constant byte address 0x4 - core index']
  #allocation1 [shape = 'u32[144,128]{1,0:T(1,128)}', space=vmem, size = 0x12000, scoped, tag = 'internal scratch']
  %s0 = inlined_call_operand.vmem [shape: f32[8,128], index: 0, kind: input, shape index: {}]
  %s1 = inlined_call_operand.vmem [shape: s32[8,1], index: 1, kind: input, shape index: {}]
  %s2 = inlined_call_operand.hbm [shape: f32[1,128], index: 2, kind: output, shape index: {}]
  %s3 = sld [smem:[#allocation0]]
  $region18: #{tpu_custom_call.1} parent=0
    _
  %s5 = ssub.s32 1, %s3
  %s6 = scalar_select 0, %s5, %s3
  $region1: #{tpu_custom_call.1} parent=0
    #allocation2 [shape = 'u8[512]{0}', space=vmem, size = 0x400, scoped, tag = 'output window, operand 0, single buffered']
    #allocation3 [shape = 's32[1]{0}', space=sflag, size = 0x4, scoped, tag = 'scoped memory for tpu_custom_call.1']
    %7 = vsyncpa [#allocation3], 0
    // Predicated region
    $region2: #{tpu_custom_call.1} parent=1 // pred_check
      _
    $region3: #{tpu_custom_call.1} parent=1 // pred_check_branch
      %9 = sbr.rel (0) target = $region5
    $region4: #{tpu_custom_call.1} parent=1 // pred_region
      _
    $region5: #{tpu_custom_call.1} parent=1 // pred_fallthru
      _
    // Predicated region
    $region6: #{tpu_custom_call.1} parent=1 // pred_check
      _
    $region7: #{tpu_custom_call.1} parent=1 // pred_check_branch
      %11 = sbr.rel (0) target = $region9
    $region8: #{tpu_custom_call.1} parent=1 // pred_region
      _
    $region9: #{tpu_custom_call.1} parent=1 // pred_fallthru
      _
    %v12 = vld [vmem:[%s0] sm:$0xff]
    %v13 = vld [vmem:[%s1] sm:$0xff]
    %14 = vmax.xlane.f32.xlu0 %v12
    %v15 = vpop.xlane.xlu0 %14
    %v16 = vsub.f32 %v12, %v15
    %v17 = vmul.f32 %v16, 1.442695
    %v18 = vpow.pop %v17
    %19 = vadd.xlane.f32.xlu0 %v18
    %v20 = vpop.xlane.xlu0 %19
    %v21 = vlog2.pop %v20
    %v22 = vmul.f32 %v21, 0.6931472
    %v23 = vadd.f32 %v15, %v22
    %v24 = vlaneseq
    %v25 = vand.u32 %v24, 127
    %vm26 = vcmp.lt.s32.totalorder %v25, 32
    %v27 = vsel %vm26, 0.0015625, 0.0
    %28 = vset.pattern.permute.xlu0 0
    %29 = vperm.xlu0 %28, %v13
    %v30 = vpop.permute.xlu0 %29
    %vm31 = vcmp.eq.s32.totalorder %v25, %v30
    %v32 = vsel %vm31, 0.9515625, %v27
    %v33 = vmul.f32 %v12, %v32
    %34 = vadd.xlane.f32.xlu0 %v33
    %v35 = vpop.xlane.xlu0 %34
    %v36 = vsub.f32 %v23, %v35
    %v37 = vrot.slane %v36, 4
    %v38 = vadd.f32 %v36, %v37
    %v39 = vrot.slane %v38, 2
    %v40 = vadd.f32 %v38, %v39
    %v41 = vrot.slane %v40, 1
    %v42 = vadd.f32 %v40, %v41
    %43 = vst [vmem:[#allocation2] sm:$0x1] %v42
    // Predicated region
    $region10: #{tpu_custom_call.1} parent=1 // pred_check
      _
    $region11: #{tpu_custom_call.1} parent=1 // pred_check_branch
      %45 = sbr.rel (0) target = $region13
    $region12: #{tpu_custom_call.1} parent=1 // pred_region
      %s47 = ssub.s32 16, 16
      %48 = vsyncadd [#allocation3], %s47
      %s50 = sshll.u32 [#allocation2], 4
      %s51 = int_to_ptr.vmem [resolvable:$true] %s50
      %53 = dma.vmem_to_hbm [thread:$0]  %s51, 16, %s2, [#allocation3]
    $region13: #{tpu_custom_call.1} parent=1 // pred_fallthru
      _
    // Predicated region
    $region14: #{tpu_custom_call.1} parent=1 // pred_check
      _
    $region15: #{tpu_custom_call.1} parent=1 // pred_check_branch
      %55 = sbr.rel (0) target = $region17
    $region16: #{tpu_custom_call.1} parent=1 // pred_region
      %56 = dma.done [#allocation3], 16
    $region17: #{tpu_custom_call.1} parent=1 // pred_fallthru
      _
    %57 = vsyncpa [#allocation3], 1

</llo_original>
